<compile_context>
chip_gen: v6e
topology: v6e:2x2x1
jax: 0.10.0
libtpu: 0.0.40
codegen_flags: <defaults>
</compile_context>

<pallas_src>
import functools

import jax
import jax.numpy as jnp
from jax.experimental import pallas as pl
from jax.experimental.pallas import tpu as pltpu


def _maxmin_kernel(x_ref, o_ref, *, hw):
    """x_ref/o_ref: (TM, 2*hw) slabs; each row = [even plane | odd plane]."""
    row = x_ref[...]
    a = row[:, :hw]          # even channel plane
    b = row[:, hw:]          # odd channel plane
    o_ref[:, :hw] = jnp.maximum(a, b)
    o_ref[:, hw:] = jnp.minimum(a, b)


def _fused_maxmin_2d(x2, hw, *, target_tile_bytes=2 * 1024 * 1024):
    """x2: (M, 2*hw) contiguous slab.  Returns same-shape result."""
    M, L = x2.shape
    assert L == 2 * hw

    # Pick the row-tile size: ~2 MiB per input tile (>=1 MiB amortizes the
    # ~0.35 us per-step overhead; double-buffered in+out stays ~4x that, well
    # under every generation's scoped VMEM default, including v5e's 16 MiB).
    row_bytes = L * jnp.dtype(x2.dtype).itemsize
    tm = max(1, target_tile_bytes // row_bytes)
    if tm >= M:
        tm = M                       # full-dim block: always layout-legal
    else:
        tm = max(8, (tm // 8) * 8)   # tiled block: sublane (8) multiple

    grid = (pl.cdiv(M, tm),)         # ragged last tile: OOB writes are masked,
                                     # which is correct for an elementwise op.
    spec = pl.BlockSpec((tm, L), lambda i: (i, 0))

    # Note: input_output_aliases={0: 0} would make this in-place (halves HBM
    # footprint) but requires the caller to donate x; left off here because
    # the self-test reuses x for the reference check.
    return pl.pallas_call(
        functools.partial(_maxmin_kernel, hw=hw),
        out_shape=jax.ShapeDtypeStruct((M, L), x2.dtype),
        grid_spec=pltpu.PrefetchScalarGridSpec(
            num_scalar_prefetch=0,
            grid=grid,
            in_specs=[spec],
            out_specs=spec,
        ),
        compiler_params=pltpu.CompilerParams(
            dimension_semantics=("parallel",),   # shard tiles across v7x TCs
        ),
    )(x2)


def maxmin(x, axis=1):
    """JAX/Pallas equivalent of parseval_reg.utils.maxmin (axis=1, NCHW)."""
    if axis != 1:
        # TODO(synk): only the module's default axis=1 (channel axis) path is
        # implemented; other axes would just need a different (free) reshape.
        raise NotImplementedError("only axis=1 supported")
    N, C, H, W = x.shape
    if C % 2:
        raise ValueError(
            "number of features({}) is not a multiple of ({})".format(C, 2)
        )
    hw = H * W
    M = N * (C // 2)
    # Free contiguous views — no data movement outside the kernel.
    x2 = x.reshape(M, 2 * hw)
    out2 = _fused_maxmin_2d(x2, hw)
    return out2.reshape(N, C, H, W)


class Maxmin:
    """JAX port of the PyTorch Maxmin module (forward only)."""

    def __init__(self, axis=1):
        self.axis = axis

    def __call__(self, x):
        return maxmin(x, self.axis)


def _maxmin_reference(x, axis=1):
    """Pure-JAX reference matching the PyTorch code (descending pair sort)."""
    N, C, H, W = x.shape
    grouped = x.reshape(N, C // 2, 2, H, W)
    sorted_grouped = -jnp.sort(-grouped, axis=axis + 1)  # descending
    return sorted_grouped.reshape(N, C, H, W)


if __name__ == "__main__":
    key = jax.random.PRNGKey(0)
    x = jax.random.normal(key, (2, 4, 16, 16), dtype=jnp.float32)

    module = Maxmin(axis=1)
    out = module(x)
    out = jax.block_until_ready(out)

    ref = _maxmin_reference(x, axis=1)
    assert out.shape == x.shape
    assert out.dtype == x.dtype
    assert jnp.allclose(out, ref), "Pallas maxmin mismatch vs reference"

    print("KERNEL_OK")
</pallas_src>

<mosaic_0001>
module attributes {stable_mosaic.version = 11 : i64} {
  func.func @_maxmin_kernel(%arg0: i32, %arg1: memref<4x512xf32, #tpu.memory_space<vmem>>, %arg2: memref<4x512xf32, #tpu.memory_space<vmem>>) attributes {dimension_semantics = [#tpu.dimension_semantics<parallel>], iteration_bounds = array<i64: 1>, scalar_prefetch = 0 : i64, scratch_operands = 0 : i64, tpu.core_type = #tpu.core_type<tc>, window_params = [{transform_indices = @transform_0, window_bounds = array<i64: 4, 512>}, {transform_indices = @transform_1, window_bounds = array<i64: 4, 512>}]} {
    %c0 = arith.constant 0 : index
    %c0_0 = arith.constant 0 : index
    %0 = vector.load %arg1[%c0, %c0_0] : memref<4x512xf32, #tpu.memory_space<vmem>>, vector<4x512xf32>
    %1 = vector.extract_strided_slice %0 {offsets = [0, 0], sizes = [4, 256], strides = [1, 1]} : vector<4x512xf32> to vector<4x256xf32>
    %2 = vector.extract_strided_slice %0 {offsets = [0, 256], sizes = [4, 256], strides = [1, 1]} : vector<4x512xf32> to vector<4x256xf32>
    %3 = arith.maximumf %1, %2 : vector<4x256xf32>
    %c0_1 = arith.constant 0 : index
    %c0_2 = arith.constant 0 : index
    %4 = vector.load %arg2[%c0_1, %c0_2] : memref<4x512xf32, #tpu.memory_space<vmem>>, vector<4x256xf32>
    tpu.vector_store %arg2[%c0_1, %c0_2], %3 {strides = array<i32>} : memref<4x512xf32, #tpu.memory_space<vmem>>, vector<4x256xf32>,
    %5 = arith.minimumf %1, %2 : vector<4x256xf32>
    %c0_3 = arith.constant 0 : index
    %c256 = arith.constant 256 : index
    %6 = vector.load %arg2[%c0_3, %c256] : memref<4x512xf32, #tpu.memory_space<vmem>>, vector<4x256xf32>
    tpu.vector_store %arg2[%c0_3, %c256], %5 {strides = array<i32>} : memref<4x512xf32, #tpu.memory_space<vmem>>, vector<4x256xf32>,
    return
  }
  func.func @transform_0(%arg0: i32) -> (i32, i32) {
    %c0_i32 = arith.constant 0 : i32
    %c0_i32_0 = arith.constant 0 : i32
    return %arg0, %c0_i32 : i32, i32
  }
  func.func @transform_1(%arg0: i32) -> (i32, i32) {
    %c0_i32 = arith.constant 0 : i32
    %c0_i32_0 = arith.constant 0 : i32
    return %arg0, %c0_i32 : i32, i32
  }
}

</mosaic_0001>

<llo_original>
// kernel: tpu_custom_call.1
$region0: #{tpu_custom_call.1}
  #allocation0 [shape = 'u32[]', space=smem, size = 0x4, offset = 0x4, fixed_abs, tag = 'smem constant byte address 0x4 - core index']
  #allocation1 [shape = 'u32[144,128]{1,0:T(1,128)}', space=vmem, size = 0x12000, scoped, tag = 'internal scratch']
  %s0 = inlined_call_operand.hbm [shape: f32[4,512], index: 0, kind: input, shape index: {}]
  %s1 = inlined_call_operand.hbm [shape: f32[4,512], index: 1, kind: output, shape index: {}]
  %s2 = sld [smem:[#allocation0]]
  $region18: #{tpu_custom_call.1} parent=0
    _
  %s4 = ssub.s32 1, %s2
  %s5 = scalar_select 0, %s4, %s2
  $region1: #{tpu_custom_call.1} parent=0
    #allocation2 [shape = 'u8[8192]{0}', space=vmem, size = 0x2000, scoped, tag = 'input window, operand 0, single buffered']
    #allocation3 [shape = 's32[1]{0}', space=sflag, size = 0x4, scoped, tag = 'scoped memory for tpu_custom_call.1']
    #allocation4 [shape = 's32[1]{0}', space=sflag, size = 0x4, scoped, tag = 'scoped memory for tpu_custom_call.1']
    #allocation5 [shape = 'u8[8192]{0}', space=vmem, size = 0x2000, scoped, tag = 'output window, operand 0, single buffered']
    %6 = vsyncpa [#allocation3], 0
    %7 = vsyncpa [#allocation4], 0
    // Predicated region
    $region2: #{tpu_custom_call.1} parent=1 // pred_check
      _
    $region3: #{tpu_custom_call.1} parent=1 // pred_check_branch
      %9 = sbr.rel (0) target = $region5
    $region4: #{tpu_custom_call.1} parent=1 // pred_region
      %s11 = ssub.s32 256, 256
      %12 = vsyncadd [#allocation3], %s11
      %s14 = sshll.u32 [#allocation2], 4
      %s15 = int_to_ptr.vmem [resolvable:$true] %s14
      %17 = dma.hbm_to_vmem [thread:$0]  %s0, 256, %s15, [#allocation3]
    $region5: #{tpu_custom_call.1} parent=1 // pred_fallthru
      _
    // Predicated region
    $region6: #{tpu_custom_call.1} parent=1 // pred_check
      _
    $region7: #{tpu_custom_call.1} parent=1 // pred_check_branch
      %19 = sbr.rel (0) target = $region9
    $region8: #{tpu_custom_call.1} parent=1 // pred_region
      %20 = dma.done [#allocation3], 256
    $region9: #{tpu_custom_call.1} parent=1 // pred_fallthru
      _
    %v21 = vld [vmem:[#allocation2] sm:$0xff]
    %v22 = vld [vmem:[#allocation2 + $0x8] sm:$0xff]
    %v23 = vmax.f32 %v21, %v22
    %24 = vst [vmem:[#allocation5] sm:$0xff] %v23
    %v25 = vmin.f32 %v21, %v22
    %26 = vst [vmem:[#allocation5 + $0x8] sm:$0xff] %v25
    // Predicated region
    $region10: #{tpu_custom_call.1} parent=1 // pred_check
      _
    $region11: #{tpu_custom_call.1} parent=1 // pred_check_branch
      %28 = sbr.rel (0) target = $region13
    $region12: #{tpu_custom_call.1} parent=1 // pred_region
      %s30 = ssub.s32 256, 256
      %31 = vsyncadd [#allocation4], %s30
      %s33 = sshll.u32 [#allocation5], 4
      %s34 = int_to_ptr.vmem [resolvable:$true] %s33
      %36 = dma.vmem_to_hbm [thread:$0]  %s34, 256, %s1, [#allocation4]
    $region13: #{tpu_custom_call.1} parent=1 // pred_fallthru
      _
    // Predicated region
    $region14: #{tpu_custom_call.1} parent=1 // pred_check
      _
    $region15: #{tpu_custom_call.1} parent=1 // pred_check_branch
      %38 = sbr.rel (0) target = $region17
    $region16: #{tpu_custom_call.1} parent=1 // pred_region
      %39 = dma.done [#allocation4], 256
    $region17: #{tpu_custom_call.1} parent=1 // pred_fallthru
      _
    %40 = vsyncpa [#allocation3], 1
    %41 = vsyncpa [#allocation4], 1

</llo_original>
